<compile_context>
chip_gen: v5e
topology: v5e:2x2
jax: 0.10.0
libtpu: 0.0.40
codegen_flags: <defaults>
</compile_context>

<pallas_src>
import math

import numpy as np
import jax
import jax.numpy as jnp
from jax.experimental import pallas as pl
from jax.experimental.pallas import tpu as pltpu


# --------------------------------------------------------------------------
# Kernels
# --------------------------------------------------------------------------

def _posemb_packed_kernel(x_ref, f_ref, m_ref, o_ref):
    """Lane-dense path.

    x_ref: (TB, 128) each timestep repeated `dim` times along lanes
    f_ref: (1, 128)  [freqs | freqs] tiled `128 // dim` times along lanes
    m_ref: (1, 128)  1.0 on sin lanes, 0.0 on cos lanes
    o_ref: (TB, 128) lane-dense packed embedding (row-major view of (B, dim))
    """
    arg = x_ref[...] * f_ref[...]                       # VPU broadcast-multiply
    emb = jnp.where(m_ref[...] > 0.5, jnp.sin(arg), jnp.cos(arg))
    o_ref[...] = emb.astype(o_ref.dtype)                # full unmasked stores


def _posemb_rows_kernel(x_ref, f_ref, o_ref):
    """Fallback path (dim does not evenly pack into 128 lanes).

    x_ref: (TB, 1) timesteps, f_ref: (1, half) freqs, o_ref: (TB, dim)
    """
    half = f_ref.shape[-1]
    arg = x_ref[...] * f_ref[...]                       # (TB, half)
    o_ref[:, :half] = jnp.sin(arg).astype(o_ref.dtype)  # direct slice stores,
    o_ref[:, half:] = jnp.cos(arg).astype(o_ref.dtype)  # no lane concatenate


# --------------------------------------------------------------------------
# Wrappers
# --------------------------------------------------------------------------

def _round_up(n, m):
    return ((n + m - 1) // m) * m


def _posemb_packed(xf, dim, freqs, block_rows, out_dtype):
    B = xf.shape[0]
    half = dim // 2
    pack = 128 // dim                     # batch elements per 128-lane row
    rows = -(-B // pack)                  # packed rows needed

    if rows <= block_rows:
        tb = max(8, _round_up(rows, 8))   # single block == full array
        rows_p = tb
    else:
        tb = block_rows
        rows_p = _round_up(rows, tb)
    bp = rows_p * pack

    # Lane-dense inputs, built by XLA outside the kernel (tiny / one pass).
    x_pad = jnp.zeros((bp,), jnp.float32).at[:B].set(xf)
    x_lanes = jnp.repeat(x_pad.reshape(rows_p, pack), dim, axis=1)   # (rows_p,128)
    f_row = jnp.tile(jnp.concatenate([freqs, freqs]), pack).reshape(1, 128)
    sin_mask = jnp.asarray(
        ((np.arange(128) % dim) < half).astype(np.float32).reshape(1, 128))

    out = pl.pallas_call(
        _posemb_packed_kernel,
        out_shape=jax.ShapeDtypeStruct((rows_p, 128), out_dtype),
        grid_spec=pltpu.PrefetchScalarGridSpec(
            num_scalar_prefetch=0,
            grid=(rows_p // tb,),
            in_specs=[
                pl.BlockSpec((tb, 128), lambda i: (i, 0)),
                pl.BlockSpec((1, 128), lambda i: (0, 0)),
                pl.BlockSpec((1, 128), lambda i: (0, 0)),
            ],
            out_specs=pl.BlockSpec((tb, 128), lambda i: (i, 0)),
        ),
        compiler_params=pltpu.CompilerParams(
            dimension_semantics=("parallel",)),
    )(x_lanes, f_row, sin_mask)

    return out.reshape(bp, dim)[:B]


def _posemb_rows(xf, dim, freqs, block_rows, out_dtype):
    B = xf.shape[0]
    half = dim // 2

    if B <= block_rows:
        tb = max(8, _round_up(B, 8))      # single block == full array
        bp = tb
    else:
        tb = block_rows
        bp = _round_up(B, tb)

    x_col = jnp.zeros((bp, 1), jnp.float32).at[:B, 0].set(xf)
    f_row = freqs.reshape(1, half)

    out = pl.pallas_call(
        _posemb_rows_kernel,
        out_shape=jax.ShapeDtypeStruct((bp, dim), out_dtype),
        grid_spec=pltpu.PrefetchScalarGridSpec(
            num_scalar_prefetch=0,
            grid=(bp // tb,),
            in_specs=[
                pl.BlockSpec((tb, 1), lambda i: (i, 0)),
                pl.BlockSpec((1, half), lambda i: (0, 0)),
            ],
            out_specs=pl.BlockSpec((tb, dim), lambda i: (i, 0)),
        ),
        compiler_params=pltpu.CompilerParams(
            dimension_semantics=("parallel",)),
    )(x_col, f_row)

    return out[:B]


def sinusoidal_pos_emb(x, dim, *, block_rows=1024, out_dtype=jnp.float32):
    """x: (B,) timesteps -> (B, dim) embedding  [sin | cos]."""
    assert dim % 2 == 0 and dim >= 4, "dim must be even and >= 4"
    half = dim // 2
    xf = x.astype(jnp.float32)
    # Hoisted out of the kernel: computed once in the wrapper (matches the
    # PyTorch freq convention bit-for-bit with the pure-JAX reference).
    freqs = jnp.exp(
        jnp.arange(half, dtype=jnp.float32) * (-math.log(10000.0) / (half - 1)))

    if dim <= 128 and 128 % dim == 0:
        return _posemb_packed(xf, dim, freqs, block_rows, out_dtype)
    return _posemb_rows(xf, dim, freqs, block_rows, out_dtype)


# --------------------------------------------------------------------------
# Pure-JAX reference (mirror of the PyTorch forward)
# --------------------------------------------------------------------------

def sinusoidal_pos_emb_ref(x, dim):
    half = dim // 2
    emb = math.log(10000.0) / (half - 1)
    emb = jnp.exp(jnp.arange(half, dtype=jnp.float32) * -emb)
    emb = x.astype(jnp.float32)[:, None] * emb[None, :]
    return jnp.concatenate([jnp.sin(emb), jnp.cos(emb)], axis=-1)


# --------------------------------------------------------------------------
# Self-test
# --------------------------------------------------------------------------

if __name__ == "__main__":
    key = jax.random.PRNGKey(0)
    k1, k2, k3 = jax.random.split(key, 3)

    def check(x, dim, **kw):
        out = jax.block_until_ready(sinusoidal_pos_emb(x, dim, **kw))
        ref = sinusoidal_pos_emb_ref(x, dim)
        assert out.shape == (x.shape[0], dim), out.shape
        assert out.dtype == jnp.float32, out.dtype
        assert jnp.allclose(out, ref, atol=1e-5, rtol=1e-5), \
            f"mismatch vs reference (dim={dim}, B={x.shape[0]})"

    # 1) Small case matching the original usage: SinusoidalPosEmb(dim=32), B=8.
    x_small = jax.random.uniform(k1, (8,), jnp.float32, minval=0.0, maxval=1000.0)
    check(x_small, 32)

    # 2) Larger batch exercising the multi-block, lane-dense gridded path.
    x_big = jax.random.uniform(k2, (4096,), jnp.float32, minval=0.0, maxval=1000.0)
    check(x_big, 32, block_rows=256)

    # 3) dim that does not evenly pack into 128 lanes -> rows fallback path.
    x_mid = jax.random.uniform(k3, (40,), jnp.float32, minval=0.0, maxval=1000.0)
    check(x_mid, 48)

    print("KERNEL_OK")
</pallas_src>

<mosaic_0001>
module attributes {stable_mosaic.version = 11 : i64} {
  func.func @_posemb_packed_kernel(%arg0: i32, %arg1: memref<8x128xf32, #tpu.memory_space<vmem>>, %arg2: memref<1x128xf32, #tpu.memory_space<vmem>>, %arg3: memref<1x128xf32, #tpu.memory_space<vmem>>, %arg4: memref<8x128xf32, #tpu.memory_space<vmem>>) attributes {dimension_semantics = [#tpu.dimension_semantics<parallel>], iteration_bounds = array<i64: 1>, scalar_prefetch = 0 : i64, scratch_operands = 0 : i64, tpu.core_type = #tpu.core_type<tc>, window_params = [{transform_indices = @transform_0, window_bounds = array<i64: 8, 128>}, {pipeline_mode = #tpu.pipeline_mode<synchronous>, transform_indices = @transform_1, window_bounds = array<i64: 1, 128>}, {pipeline_mode = #tpu.pipeline_mode<synchronous>, transform_indices = @transform_2, window_bounds = array<i64: 1, 128>}, {transform_indices = @transform_3, window_bounds = array<i64: 8, 128>}]} {
    %c0 = arith.constant 0 : index
    %c0_0 = arith.constant 0 : index
    %0 = vector.load %arg1[%c0, %c0_0] : memref<8x128xf32, #tpu.memory_space<vmem>>, vector<8x128xf32>
    %c0_1 = arith.constant 0 : index
    %c0_2 = arith.constant 0 : index
    %1 = vector.load %arg2[%c0_1, %c0_2] : memref<1x128xf32, #tpu.memory_space<vmem>>, vector<1x128xf32>
    %2 = vector.broadcast %1 : vector<1x128xf32> to vector<8x128xf32>
    %3 = arith.mulf %0, %2 : vector<8x128xf32>
    %c0_3 = arith.constant 0 : index
    %c0_4 = arith.constant 0 : index
    %4 = vector.load %arg3[%c0_3, %c0_4] : memref<1x128xf32, #tpu.memory_space<vmem>>, vector<1x128xf32>
    %cst = arith.constant 5.000000e-01 : f32
    %5 = vector.broadcast %cst : f32 to vector<1x128xf32>
    %6 = arith.cmpf ogt, %4, %5 : vector<1x128xf32>
    %7 = math.sin %3 : vector<8x128xf32>
    %8 = math.cos %3 : vector<8x128xf32>
    %9 = vector.shape_cast %6 : vector<1x128xi1> to vector<1x128xi1>
    %10 = vector.broadcast %9 : vector<1x128xi1> to vector<8x128xi1>
    %11 = arith.select %10, %7, %8 : vector<8x128xi1>, vector<8x128xf32>
    %c0_5 = arith.constant 0 : index
    %c0_6 = arith.constant 0 : index
    %12 = vector.load %arg4[%c0_5, %c0_6] : memref<8x128xf32, #tpu.memory_space<vmem>>, vector<8x128xf32>
    tpu.vector_store %arg4[%c0_5, %c0_6], %11 {strides = array<i32>} : memref<8x128xf32, #tpu.memory_space<vmem>>, vector<8x128xf32>,
    return
  }
  func.func @transform_0(%arg0: i32) -> (i32, i32) {
    %c0_i32 = arith.constant 0 : i32
    %c0_i32_0 = arith.constant 0 : i32
    return %arg0, %c0_i32 : i32, i32
  }
  func.func @transform_1(%arg0: i32) -> (i32, i32) {
    %c0_i32 = arith.constant 0 : i32
    %c0_i32_0 = arith.constant 0 : i32
    %c0_i32_1 = arith.constant 0 : i32
    return %c0_i32, %c0_i32_0 : i32, i32
  }
  func.func @transform_2(%arg0: i32) -> (i32, i32) {
    %c0_i32 = arith.constant 0 : i32
    %c0_i32_0 = arith.constant 0 : i32
    %c0_i32_1 = arith.constant 0 : i32
    return %c0_i32, %c0_i32_0 : i32, i32
  }
  func.func @transform_3(%arg0: i32) -> (i32, i32) {
    %c0_i32 = arith.constant 0 : i32
    %c0_i32_0 = arith.constant 0 : i32
    return %arg0, %c0_i32 : i32, i32
  }
}

</mosaic_0001>

<llo_original>
// kernel: tpu_custom_call.1
$region0: #{tpu_custom_call.1}
  #allocation0 [shape = 'u32[]', space=smem, size = 0x4, offset = 0x4, fixed_abs, tag = 'smem constant byte address 0x4 - core index']
  #allocation1 [shape = 'u32[72,128]{1,0:T(1,128)}', space=vmem, size = 0x9000, scoped, tag = 'internal scratch']
  %s0 = inlined_call_operand.hbm [shape: f32[8,128], index: 0, kind: input, shape index: {}]
  %s1 = inlined_call_operand.hbm [shape: f32[1,128], index: 1, kind: input, shape index: {}]
  %s2 = inlined_call_operand.vmem [shape: f32[1,128], index: 2, kind: input, shape index: {}]
  %s3 = inlined_call_operand.hbm [shape: f32[8,128], index: 3, kind: output, shape index: {}]
  %s4 = sld [smem:[#allocation0]]
  $region30: #{tpu_custom_call.1} parent=0
    _
  %s6 = ssub.s32 1, %s4
  %s7 = scalar_select 0, %s6, %s4
  $region1: #{tpu_custom_call.1} parent=0
    #allocation2 [shape = 'u8[4096]{0}', space=vmem, size = 0x1000, scoped, tag = 'input window, operand 0, single buffered']
    #allocation3 [shape = 's32[1]{0}', space=sflag, size = 0x4, scoped, tag = 'scoped memory for tpu_custom_call.1']
    #allocation4 [shape = 's32[1]{0}', space=sflag, size = 0x4, scoped, tag = 'scoped memory for tpu_custom_call.1']
    #allocation5 [shape = 'u8[512]{0}', space=vmem, size = 0x400, scoped, tag = 'input window, operand 1, single buffered']
    #allocation6 [shape = 's32[1]{0}', space=sflag, size = 0x4, scoped, tag = 'scoped memory for tpu_custom_call.1']
    #allocation7 [shape = 'u8[4096]{0}', space=vmem, size = 0x1000, scoped, tag = 'output window, operand 0, single buffered']
    %8 = vsyncpa [#allocation3], 0
    %9 = vsyncpa [#allocation6], 0
    %10 = vsyncpa [#allocation4], 0
    // Predicated region
    $region2: #{tpu_custom_call.1} parent=1 // pred_check
      _
    $region3: #{tpu_custom_call.1} parent=1 // pred_check_branch
      %12 = sbr.rel (0) target = $region5
    $region4: #{tpu_custom_call.1} parent=1 // pred_region
      %14 = vsyncadd [#allocation3], 0
      %s16 = sshll.u32 %s0, 4
      %s17 = int_to_ptr.hbm [resolvable:$true] %s16
      %s18 = sshll.u32 [#allocation2], 4
      %s19 = int_to_ptr.vmem [resolvable:$true] %s18
      %21 = dma.hbm_to_vmem [thread:$0]  %s17, 128, %s19, [#allocation3]
    $region5: #{tpu_custom_call.1} parent=1 // pred_fallthru
      _
    // Predicated region
    $region6: #{tpu_custom_call.1} parent=1 // pred_check
      _
    $region7: #{tpu_custom_call.1} parent=1 // pred_check_branch
      %23 = sbr.rel (0) target = $region9
    $region8: #{tpu_custom_call.1} parent=1 // pred_region
      %25 = vsyncadd [#allocation6], 0
      %s27 = sshll.u32 %s1, 4
      %s28 = int_to_ptr.hbm [resolvable:$true] %s27
      %s29 = sshll.u32 [#allocation5], 4
      %s30 = int_to_ptr.vmem [resolvable:$true] %s29
      %32 = dma.hbm_to_vmem [thread:$0]  %s28, 16, %s30, [#allocation6]
    $region9: #{tpu_custom_call.1} parent=1 // pred_fallthru
      _
    // Predicated region
    $region10: #{tpu_custom_call.1} parent=1 // pred_check
      _
    $region11: #{tpu_custom_call.1} parent=1 // pred_check_branch
      %34 = sbr.rel (0) target = $region13
    $region12: #{tpu_custom_call.1} parent=1 // pred_region
      _
    $region13: #{tpu_custom_call.1} parent=1 // pred_fallthru
      _
    // Predicated region
    $region14: #{tpu_custom_call.1} parent=1 // pred_check
      _
    $region15: #{tpu_custom_call.1} parent=1 // pred_check_branch
      %36 = sbr.rel (0) target = $region17
    $region16: #{tpu_custom_call.1} parent=1 // pred_region
      %38 = dma.done [#allocation3], 128
    $region17: #{tpu_custom_call.1} parent=1 // pred_fallthru
      _
    // Predicated region
    $region18: #{tpu_custom_call.1} parent=1 // pred_check
      _
    $region19: #{tpu_custom_call.1} parent=1 // pred_check_branch
      %40 = sbr.rel (0) target = $region21
    $region20: #{tpu_custom_call.1} parent=1 // pred_region
      %42 = dma.done [#allocation6], 16
    $region21: #{tpu_custom_call.1} parent=1 // pred_fallthru
      _
    %v43 = vld [vmem:[#allocation2] sm:$0xff]
    %v44 = vld [vmem:[#allocation5] sm:$0x1]
    %v46 = vperm.slane %v44, 0
    %v48 = vmul.f32 %v43, %v46
    %v49 = vld [vmem:[%s2] sm:$0x1]
    %vm50 = vcmp.gt.f32.partialorder %v49, 0.5
    %v51 = vand.u32 2147483647, %v48
    %vm52 = vcmp.le.f32.partialorder %v51, 0.7853982
    %vm53 = vcmp.lt.s32.totalorder %v48, 0
    %v54 = vand.u32 %v48, 2139095040
    %v55 = vshrl.u32 %v54, 23
    %v56 = vsub.s32 %v55, 127
    %v57 = vand.u32 2147483647, %v48
    %v58 = vand.u32 %v57, 8388607
    %v59 = vor.u32 %v58, 8388608
    %v60 = vsub.s32 0, %v59
    %v61 = vadd.s32 %v56, 1
    %vm62 = vcmp.gt.s32.totalorder %v61, 0
    %v63 = vsel %vm62, %v61, 0
    %v64 = vshrl.u32 %v63, 5
    %v65 = vand.u32 %v63, 31
    %v66 = vsub.s32 32, %v65
    %v67 = vshrl.u32 683565275, %v66
    %v68 = vshll.u32 683565275, %v65
    %v69 = vshrl.u32 2475754826, %v66
    %v70 = vor.u32 %v68, %v69
    %v71 = vshll.u32 2475754826, %v65
    %v72 = vshrl.u32 2131351028, %v66
    %v73 = vor.u32 %v71, %v72
    %v74 = vshll.u32 2131351028, %v65
    %v75 = vshrl.u32 2102212464, %v66
    %v76 = vor.u32 %v74, %v75
    %v77 = vshll.u32 2102212464, %v65
    %v78 = vshrl.u32 920167782, %v66
    %v79 = vor.u32 %v77, %v78
    %v80 = vshll.u32 920167782, %v65
    %v81 = vshrl.u32 1326507024, %v66
    %v82 = vor.u32 %v80, %v81
    %vm83 = vcmp.lt.s32.totalorder %v64, 1
    %vm84 = vcmp.lt.s32.totalorder %v64, 2
    %vm85 = vcmp.lt.s32.totalorder %v64, 3
    %vm86 = vcmp.lt.s32.totalorder %v64, 4
    %v87 = vsel %vm83, %v67, %v70
    %v88 = vsel %vm86, %v76, 2102212464
    %v89 = vsel %vm85, %v73, %v88
    %v90 = vsel %vm84, %v87, %v89
    %v91 = vsel %vm83, %v70, %v73
    %v92 = vsel %vm86, %v79, 920167782
    %v93 = vsel %vm85, %v76, %v92
    %v94 = vsel %vm84, %v91, %v93
    %v95 = vsel %vm83, %v73, %v76
    %v96 = vsel %vm86, %v82, 1326507024
    %v97 = vsel %vm85, %v79, %v96
    %v98 = vsel %vm84, %v95, %v97
    %v99 = vshll.u32 %v59, 8
    %v100 = vand.u32 %v99, 65535
    %v101 = vshrl.u32 %v99, 16
    %v102 = vand.u32 %v98, 65535
    %v103 = vshrl.u32 %v98, 16
    %v104 = vmul.u32 %v100, %v102
    %v105 = vmul.u32 %v100, %v103
    %v106 = vmul.u32 %v101, %v102
    %v107 = vmul.u32 %v101, %v103
    %v108 = vshll.u32 %v105, 16
    %v109 = vshrl.u32 %v105, 16
    %v110 = vshll.u32 %v106, 16
    %v111 = vshrl.u32 %v106, 16
    %vm112 = vc.u32 %v104, %v108
    %v113 = vsel %vm112, 1, 0
    %v114 = vadd.s32 %v104, %v108
    %v115 = vadd.s32 %v107, %v113
    %vm116 = vc.u32 %v114, %v110
    %v117 = vsel %vm116, 1, 0
    %v118 = vadd.s32 %v114, %v110
    %v119 = vadd.s32 %v115, %v117
    %v120 = vadd.s32 %v119, %v109
    %v121 = vadd.s32 %v120, %v111
    %v122 = vand.u32 %v99, 65535
    %v123 = vshrl.u32 %v99, 16
    %v124 = vand.u32 %v94, 65535
    %v125 = vshrl.u32 %v94, 16
    %v126 = vmul.u32 %v122, %v124
    %v127 = vmul.u32 %v122, %v125
    %v128 = vmul.u32 %v123, %v124
    %v129 = vmul.u32 %v123, %v125
    %v130 = vshll.u32 %v127, 16
    %v131 = vshrl.u32 %v127, 16
    %v132 = vshll.u32 %v128, 16
    %v133 = vshrl.u32 %v128, 16
    %vm134 = vc.u32 %v126, %v130
    %v135 = vsel %vm134, 1, 0
    %v136 = vadd.s32 %v126, %v130
    %v137 = vadd.s32 %v129, %v135
    %vm138 = vc.u32 %v136, %v132
    %v139 = vsel %vm138, 1, 0
    %v140 = vadd.s32 %v136, %v132
    %v141 = vadd.s32 %v137, %v139
    %v142 = vadd.s32 %v141, %v131
    %v143 = vadd.s32 %v142, %v133
    %v144 = vmul.u32 %v99, %v90
    %v145 = vadd.s32 %v121, %v140
    %vm146 = vc.u32 %v121, %v140
    %v147 = vadd.s32 %v143, 1
    %v148 = vsel %vm146, %v147, %v143
    %v149 = vadd.s32 %v144, %v148
    %v150 = vadd.s32 %v149, 536870912
    %v151 = vshrl.u32 %v150, 30
    %v152 = vshll.u32 %v151, 30
    %v153 = vsub.s32 %v149, %v152
    %vm154 = vcmp.lt.s32.totalorder %v153, 0
    %v155 = vsub.s32 0, %v153
    %v156 = vsel %vm154, %v155, %v153
    %v157 = vclz %v156
    %v158 = vsub.s32 %v157, 2
    %vm159 = vcmp.gt.s32.totalorder 0, %v158
    %v160 = vsel %vm159, 0, %v158
    %v161 = vsub.s32 32, %v160
    %v162 = vshll.u32 %v153, %v160
    %v163 = vshrl.u32 %v145, %v161
    %v164 = vor.u32 %v162, %v163
    %v165 = vsub.s32 4294967266, %v160
    %v166 = vadd.s32 %v165, 127
    %v167 = vshll.u32 %v166, 23
    %v168 = vor.u32 4788187, %v167
    %v169 = vand.u32 2147483647, %v168
    %v171 = vcvt.s32.f32 %v164
    %v172 = vmul.f32 %v171, %v169
    %v173 = vxor.u32 %v172, 2147483648
    %v174 = vsel %vm53, %v173, %v172
    %v175 = vsub.s32 4, %v151
    %v176 = vsel %vm53, %v175, %v151
    %v177 = vsel %vm52, %v48, %v174
    %v178 = vsel %vm52, 0, %v176
    %v179 = vmul.f32 %v177, %v177
    %v180 = vmul.f32 %v179, -0.001358992
    %v181 = vadd.f32 %v180, 0.041655596
    %v182 = vmul.f32 %v179, %v181
    %v183 = vadd.f32 %v182, -0.4999988
    %v184 = vmul.f32 %v179, %v183
    %v185 = vadd.f32 1.0, %v184
    %v186 = vmul.f32 %v177, %v177
    %v187 = vmul.f32 %v186, -0.00019511016
    %v188 = vadd.f32 %v187, 0.008332121
    %v189 = vmul.f32 %v186, %v188
    %v190 = vadd.f32 %v189, -0.16666654
    %v191 = vmul.f32 %v186, %v190
    %v192 = vadd.f32 %v191, 1.0
    %v193 = vmul.f32 %v192, %v177
    %vm194 = vweird.f32 %v48
    %v195 = vadd.s32 %v178, 3
    %v196 = vand.u32 %v195, 3
    %vm197 = vcmp.lt.s32.totalorder %v196, 2
    %vm198 = vcmp.eq.s32.totalorder %v196, 0
    %v199 = vxor.u32 %v193, 2147483648
    %v200 = vsel %vm198, %v185, %v199
    %vm201 = vcmp.eq.s32.totalorder %v196, 2
    %v202 = vxor.u32 %v185, 2147483648
    %v203 = vsel %vm201, %v202, %v193
    %v204 = vsel %vm197, %v200, %v203
    %v205 = vsel %vm194, nan, %v204
    %v206 = vand.u32 2147483647, %v48
    %vm207 = vcmp.le.f32.partialorder %v206, 0.7853982
    %vm208 = vcmp.lt.s32.totalorder %v48, 0
    %v209 = vand.u32 %v48, 2139095040
    %v210 = vshrl.u32 %v209, 23
    %v211 = vsub.s32 %v210, 127
    %v212 = vand.u32 2147483647, %v48
    %v213 = vand.u32 %v212, 8388607
    %v214 = vor.u32 %v213, 8388608
    %v215 = vsub.s32 0, %v214
    %v216 = vadd.s32 %v211, 1
    %vm217 = vcmp.gt.s32.totalorder %v216, 0
    %v218 = vsel %vm217, %v216, 0
    %v219 = vshrl.u32 %v218, 5
    %v220 = vand.u32 %v218, 31
    %v221 = vsub.s32 32, %v220
    %v222 = vshrl.u32 683565275, %v221
    %v223 = vshll.u32 683565275, %v220
    %v224 = vshrl.u32 2475754826, %v221
    %v225 = vor.u32 %v223, %v224
    %v226 = vshll.u32 2475754826, %v220
    %v227 = vshrl.u32 2131351028, %v221
    %v228 = vor.u32 %v226, %v227
    %v229 = vshll.u32 2131351028, %v220
    %v230 = vshrl.u32 2102212464, %v221
    %v231 = vor.u32 %v229, %v230
    %v232 = vshll.u32 2102212464, %v220
    %v233 = vshrl.u32 920167782, %v221
    %v234 = vor.u32 %v232, %v233
    %v235 = vshll.u32 920167782, %v220
    %v236 = vshrl.u32 1326507024, %v221
    %v237 = vor.u32 %v235, %v236
    %vm238 = vcmp.lt.s32.totalorder %v219, 1
    %vm239 = vcmp.lt.s32.totalorder %v219, 2
    %vm240 = vcmp.lt.s32.totalorder %v219, 3
    %vm241 = vcmp.lt.s32.totalorder %v219, 4
    %v242 = vsel %vm238, %v222, %v225
    %v243 = vsel %vm241, %v231, 2102212464
    %v244 = vsel %vm240, %v228, %v243
    %v245 = vsel %vm239, %v242, %v244
    %v246 = vsel %vm238, %v225, %v228
    %v247 = vsel %vm241, %v234, 920167782
    %v248 = vsel %vm240, %v231, %v247
    %v249 = vsel %vm239, %v246, %v248
    %v250 = vsel %vm238, %v228, %v231
    %v251 = vsel %vm241, %v237, 1326507024
    %v252 = vsel %vm240, %v234, %v251
    %v253 = vsel %vm239, %v250, %v252
    %v254 = vshll.u32 %v214, 8
    %v255 = vand.u32 %v254, 65535
    %v256 = vshrl.u32 %v254, 16
    %v257 = vand.u32 %v253, 65535
    %v258 = vshrl.u32 %v253, 16
    %v259 = vmul.u32 %v255, %v257
    %v260 = vmul.u32 %v255, %v258
    %v261 = vmul.u32 %v256, %v257
    %v262 = vmul.u32 %v256, %v258
    %v263 = vshll.u32 %v260, 16
    %v264 = vshrl.u32 %v260, 16
    %v265 = vshll.u32 %v261, 16
    %v266 = vshrl.u32 %v261, 16
    %vm267 = vc.u32 %v259, %v263
    %v268 = vsel %vm267, 1, 0
    %v269 = vadd.s32 %v259, %v263
    %v270 = vadd.s32 %v262, %v268
    %vm271 = vc.u32 %v269, %v265
    %v272 = vsel %vm271, 1, 0
    %v273 = vadd.s32 %v269, %v265
    %v274 = vadd.s32 %v270, %v272
    %v275 = vadd.s32 %v274, %v264
    %v276 = vadd.s32 %v275, %v266
    %v277 = vand.u32 %v254, 65535
    %v278 = vshrl.u32 %v254, 16
    %v279 = vand.u32 %v249, 65535
    %v280 = vshrl.u32 %v249, 16
    %v281 = vmul.u32 %v277, %v279
    %v282 = vmul.u32 %v277, %v280
    %v283 = vmul.u32 %v278, %v279
    %v284 = vmul.u32 %v278, %v280
    %v285 = vshll.u32 %v282, 16
    %v286 = vshrl.u32 %v282, 16
    %v287 = vshll.u32 %v283, 16
    %v288 = vshrl.u32 %v283, 16
    %vm289 = vc.u32 %v281, %v285
    %v290 = vsel %vm289, 1, 0
    %v291 = vadd.s32 %v281, %v285
    %v292 = vadd.s32 %v284, %v290
    %vm293 = vc.u32 %v291, %v287
    %v294 = vsel %vm293, 1, 0
    %v295 = vadd.s32 %v291, %v287
    %v296 = vadd.s32 %v292, %v294
    %v297 = vadd.s32 %v296, %v286
    %v298 = vadd.s32 %v297, %v288
    %v299 = vmul.u32 %v254, %v245
    %v300 = vadd.s32 %v276, %v295
    %vm301 = vc.u32 %v276, %v295
    %v302 = vadd.s32 %v298, 1
    %v303 = vsel %vm301, %v302, %v298
    %v304 = vadd.s32 %v299, %v303
    %v305 = vadd.s32 %v304, 536870912
    %v306 = vshrl.u32 %v305, 30
    %v307 = vshll.u32 %v306, 30
    %v308 = vsub.s32 %v304, %v307
    %vm309 = vcmp.lt.s32.totalorder %v308, 0
    %v310 = vsub.s32 0, %v308
    %v311 = vsel %vm309, %v310, %v308
    %v312 = vclz %v311
    %v313 = vsub.s32 %v312, 2
    %vm314 = vcmp.gt.s32.totalorder 0, %v313
    %v315 = vsel %vm314, 0, %v313
    %v316 = vsub.s32 32, %v315
    %v317 = vshll.u32 %v308, %v315
    %v318 = vshrl.u32 %v300, %v316
    %v319 = vor.u32 %v317, %v318
    %v320 = vsub.s32 4294967266, %v315
    %v321 = vadd.s32 %v320, 127
    %v322 = vshll.u32 %v321, 23
    %v323 = vor.u32 4788187, %v322
    %v324 = vand.u32 2147483647, %v323
    %v326 = vcvt.s32.f32 %v319
    %v327 = vmul.f32 %v326, %v324
    %v328 = vxor.u32 %v327, 2147483648
    %v329 = vsel %vm208, %v328, %v327
    %v330 = vsub.s32 4, %v306
    %v331 = vsel %vm208, %v330, %v306
    %v332 = vsel %vm207, %v48, %v329
    %v333 = vsel %vm207, 0, %v331
    %v334 = vmul.f32 %v332, %v332
    %v335 = vmul.f32 %v334, -0.001358992
    %v336 = vadd.f32 %v335, 0.041655596
    %v337 = vmul.f32 %v334, %v336
    %v338 = vadd.f32 %v337, -0.4999988
    %v339 = vmul.f32 %v334, %v338
    %v340 = vadd.f32 1.0, %v339
    %v341 = vmul.f32 %v332, %v332
    %v342 = vmul.f32 %v341, -0.00019511016
    %v343 = vadd.f32 %v342, 0.008332121
    %v344 = vmul.f32 %v341, %v343
    %v345 = vadd.f32 %v344, -0.16666654
    %v346 = vmul.f32 %v341, %v345
    %v347 = vadd.f32 %v346, 1.0
    %v348 = vmul.f32 %v347, %v332
    %vm349 = vweird.f32 %v48
    %v350 = vand.u32 %v333, 3
    %vm351 = vcmp.lt.s32.totalorder %v350, 2
    %vm352 = vcmp.eq.s32.totalorder %v350, 0
    %v353 = vxor.u32 %v348, 2147483648
    %v354 = vsel %vm352, %v340, %v353
    %vm355 = vcmp.eq.s32.totalorder %v350, 2
    %v356 = vxor.u32 %v340, 2147483648
    %v357 = vsel %vm355, %v356, %v348
    %v358 = vsel %vm351, %v354, %v357
    %v359 = vsel %vm349, nan, %v358
    %v360 = vsel %vm50, 1, 0
    %v361 = vperm.slane %v360, 0
    %vm362 = vcmp.eq.s32.totalorder %v361, 1
    %v363 = vsel %vm362, %v205, %v359
    %364 = vst [vmem:[#allocation7] sm:$0xff] %v363
    // Predicated region
    $region22: #{tpu_custom_call.1} parent=1 // pred_check
      _
    $region23: #{tpu_custom_call.1} parent=1 // pred_check_branch
      %366 = sbr.rel (0) target = $region25
    $region24: #{tpu_custom_call.1} parent=1 // pred_region
      %368 = vsyncadd [#allocation4], 0
      %s370 = sshll.u32 [#allocation7], 4
      %s371 = int_to_ptr.vmem [resolvable:$true] %s370
      %s372 = sshll.u32 %s3, 4
      %s373 = int_to_ptr.hbm [resolvable:$true] %s372
      %375 = dma.vmem_to_hbm [thread:$0]  %s371, 128, %s373, [#allocation4]
    $region25: #{tpu_custom_call.1} parent=1 // pred_fallthru
      _
    // Predicated region
    $region26: #{tpu_custom_call.1} parent=1 // pred_check
      _
    $region27: #{tpu_custom_call.1} parent=1 // pred_check_branch
      %377 = sbr.rel (0) target = $region29
    $region28: #{tpu_custom_call.1} parent=1 // pred_region
      %379 = dma.done [#allocation4], 128
    $region29: #{tpu_custom_call.1} parent=1 // pred_fallthru
      _
    %380 = vsyncpa [#allocation3], 1
    %381 = vsyncpa [#allocation6], 1
    %382 = vsyncpa [#allocation4], 1

</llo_original>
